<compile_context>
chip_gen: v5e
topology: v5e:2x2
jax: 0.10.0
libtpu: 0.0.40
codegen_flags: <defaults>
</compile_context>

<pallas_src>
import functools

import jax
import jax.numpy as jnp
from jax.experimental import pallas as pl
from jax.experimental.pallas import tpu as pltpu

_LANE = 128


# ---------------------------------------------------------------------------
# Kernels: elementwise add of the (resident or tiled) pos block.
# ---------------------------------------------------------------------------

def _add_pos_4d_kernel(x_ref, pos_ref, o_ref, *, thw):
    # x_ref / o_ref: (1, C, thw).  pos_ref: (C, HW) resident, or (C, thw) tiled.
    if thw != pos_ref.shape[-1]:
        start = pl.multiple_of(pl.program_id(0) * thw, _LANE)
        pos = pos_ref[:, pl.ds(start, thw)]
    else:
        pos = pos_ref[...]
    o_ref[...] = x_ref[...] + pos[None]


def _add_pos_5d_kernel(x_ref, pos_ref, o_ref, *, thw):
    # x_ref / o_ref: (1, C, T, thw).  pos broadcast over the time dim.
    if thw != pos_ref.shape[-1]:
        start = pl.multiple_of(pl.program_id(0) * thw, _LANE)
        pos = pos_ref[:, pl.ds(start, thw)]
    else:
        pos = pos_ref[...]
    o_ref[...] = x_ref[...] + pos[None, :, None, :]


# ---------------------------------------------------------------------------
# Chip-aware configuration + tiling helpers
# ---------------------------------------------------------------------------

def _chip_config():
    """(target x-block bytes, VMEM capacity cap) with safe fallbacks."""
    target, cap = 2 << 20, 64 << 20
    kind = ""
    try:
        kind = jax.devices()[0].device_kind.lower()
    except Exception:
        pass
    # v6e / v7x: higher HBM BW makes 2 MiB blocks overhead-dominated -> 4 MiB.
    if ("v6" in kind) or ("v7" in kind) or ("7x" in kind):
        target = 4 << 20
    try:
        cap = int(pltpu.get_tpu_info().vmem_capacity_bytes)
    except Exception:
        pass
    return target, cap


def _pick_hw_tile(hw, row_bytes_per_lane, target_bytes):
    """Largest multiple-of-128 divisor of hw (hw is already a multiple of 128)
    keeping one x block at ~target_bytes, counting sublane-padded rows."""
    max_lanes = max((target_bytes // max(row_bytes_per_lane, 1)) // _LANE * _LANE,
                    _LANE)
    t = min(hw, max_lanes)
    while hw % t != 0:   # terminates: 128 divides hw
        t -= _LANE
    return t


# ---------------------------------------------------------------------------
# Forward wrapper (matches PositionEmbedding2DLearned.forward)
# ---------------------------------------------------------------------------

def position_embedding_2d_learned(x, row_w, col_w, *, target_block_bytes=None,
                                  donate_x=False):
    """x: (B, C, H, W) or (B, C, T, H, W); row_w: (n_row, C); col_w: (n_col, C)."""
    if x.ndim not in (4, 5):
        raise ValueError("x must be 4D (B,C,H,W) or 5D (B,C,T,H,W)")

    C = x.shape[1]
    H, W = x.shape[-2], x.shape[-1]
    n_row, feats_r = row_w.shape
    n_col, feats_c = col_w.shape
    if feats_r != C or feats_c != C:
        raise ValueError(f"feats_dim ({feats_r},{feats_c}) must equal C ({C})")
    if H > n_row or W > n_col:
        raise ValueError(f"H={H} / W={W} exceed embedding tables ({n_row},{n_col})")

    # Tiny precompute: pos[c, h*W + w] = row_w[h, c] + col_w[w, c]
    pos = row_w[:H, :][:, None, :] + col_w[:W, :][None, :, :]        # (H, W, C)
    pos = jnp.transpose(pos, (2, 0, 1)).reshape(C, H * W).astype(x.dtype)

    HW = H * W
    bpe = jnp.dtype(x.dtype).itemsize
    sub_q = max(8, 32 // bpe)                  # sublane quantum: 8 f32, 16 bf16
    target, vmem_cap = _chip_config()
    if target_block_bytes is not None:
        target = int(target_block_bytes)

    # Free contiguous reshape: merge trailing (H, W) -> HW.  No transposes.
    if x.ndim == 4:
        B = x.shape[0]
        T = None
        x_flat = x.reshape(B, C, HW)
        rows_eff = -(-C // sub_q) * sub_q                      # sublane-padded C
    else:
        B, _, T = x.shape[:3]
        x_flat = x.reshape(B, C, T, HW)
        rows_eff = C * (-(-T // sub_q) * sub_q)                # sublane pad on T

    # Keep the lane dim a multiple of 128 (full-width vst, capped tiles).
    HW_pad = -(-HW // _LANE) * _LANE
    if HW_pad != HW:
        pad = [(0, 0)] * (x_flat.ndim - 1) + [(0, HW_pad - HW)]
        x_flat = jnp.pad(x_flat, pad)
        pos = jnp.pad(pos, ((0, 0), (0, HW_pad - HW)))
        donate_x = False   # aliasing the original buffer is no longer meaningful

    thw = _pick_hw_tile(HW_pad, rows_eff * bpe, target)
    n_hw = HW_pad // thw
    # Ensure >= 2 parallel grid steps so v7x megacore sharding can engage.
    if n_hw * B < 2 and thw % (2 * _LANE) == 0:
        thw //= 2
        n_hw = HW_pad // thw

    # pos: fully resident (fetched once) when small; otherwise a per-hw-tile
    # block that only re-fetches when the hw tile changes (b is innermost).
    pos_rows_eff = -(-C // sub_q) * sub_q
    pos_full_bytes = pos_rows_eff * HW_pad * bpe
    pos_resident = pos_full_bytes <= (1 << 20)
    if pos_resident:
        pos_spec = pl.BlockSpec((C, HW_pad), lambda t, b: (0, 0))
        pos_buf_bytes = pos_full_bytes
    else:
        pos_spec = pl.BlockSpec((C, thw), lambda t, b: (0, t))
        pos_buf_bytes = pos_rows_eff * thw * bpe

    # Explicit VMEM budget: double-buffered x in + out, 2 pos buffers, headroom.
    x_block_bytes = rows_eff * thw * bpe
    vmem_needed = 2 * 2 * x_block_bytes + 2 * pos_buf_bytes + (4 << 20)
    vmem_limit = min(max(vmem_needed, 16 << 20), vmem_cap)

    cparams = pltpu.CompilerParams(
        dimension_semantics=("parallel", "parallel"),
        vmem_limit_bytes=int(vmem_limit))
    aliases = {0: 0} if donate_x else {}

    if x.ndim == 4:
        kernel = functools.partial(_add_pos_4d_kernel, thw=thw)
        x_spec = pl.BlockSpec((1, C, thw), lambda t, b: (b, 0, t))
        out_shape = jax.ShapeDtypeStruct((B, C, HW_pad), x.dtype)
    else:
        kernel = functools.partial(_add_pos_5d_kernel, thw=thw)
        x_spec = pl.BlockSpec((1, C, T, thw), lambda t, b: (b, 0, 0, t))
        out_shape = jax.ShapeDtypeStruct((B, C, T, HW_pad), x.dtype)

    out = pl.pallas_call(
        kernel,
        out_shape=out_shape,
        grid=(n_hw, B),                        # b innermost -> pos block stays put
        in_specs=[x_spec, pos_spec],
        out_specs=x_spec,
        compiler_params=cparams,
        input_output_aliases=aliases,
    )(x_flat, pos)

    if HW_pad != HW:
        out = out[..., :HW]
    if x.ndim == 4:
        return out.reshape(B, C, H, W)
    return out.reshape(B, C, T, H, W)


# ---------------------------------------------------------------------------
# Demo / correctness checks
# ---------------------------------------------------------------------------

def _trunc_normal(key, shape, std=1.0, a=-2.0, b=2.0):
    # deterministic stand-in for torch.nn.init.trunc_normal_ (mean=0, std=1)
    return std * jax.random.truncated_normal(key, a, b, shape, jnp.float32)


def _reference(x, row_w, col_w):
    H, W = x.shape[-2], x.shape[-1]
    pos = jnp.transpose(row_w[:H][:, None, :] + col_w[:W][None, :, :], (2, 0, 1))
    pos = pos.astype(x.dtype)
    if x.ndim == 5:
        return x + pos[None, :, None, :, :]
    return x + pos[None]


def _check(out, x, row_w, col_w, name):
    ref = _reference(x, row_w, col_w)
    assert out.shape == x.shape and out.dtype == x.dtype, f"{name}: shape/dtype"
    assert jnp.allclose(out, ref, atol=1e-6), f"{name}: mismatch vs reference"


if __name__ == "__main__":
    # module config: n_row = n_col = 16, feats_dim = C = 4
    B, C, H, W, T = 2, 4, 16, 16, 8
    n_row, n_col, feats_dim = 16, 16, C

    key = jax.random.PRNGKey(0)
    kx, kx5, kr, kc, kx3, kr3, kc3, kx4, kx5b, kx6 = jax.random.split(key, 10)

    row_w = _trunc_normal(kr, (n_row, feats_dim))   # row_embed.weight
    col_w = _trunc_normal(kc, (n_col, feats_dim))   # col_embed.weight

    # 1) canonical 4D path (B, C, H, W)
    x4 = jax.random.normal(kx, (B, C, H, W), jnp.float32)
    out4 = jax.block_until_ready(position_embedding_2d_learned(x4, row_w, col_w))
    _check(out4, x4, row_w, col_w, "4D")

    # 2) canonical 5D path (B, C, T, H, W), pos broadcast over T
    x5 = jax.random.normal(kx5, (B, C, T, H, W), jnp.float32)
    out5 = jax.block_until_ready(position_embedding_2d_learned(x5, row_w, col_w))
    _check(out5, x5, row_w, col_w, "5D")

    # 3) 5D with a tiny block target -> multiple hw tiles, resident-pos slicing
    x5b = jax.random.normal(kx5b, (1, C, T, H, W), jnp.float32)
    out5b = jax.block_until_ready(
        position_embedding_2d_learned(x5b, row_w, col_w, target_block_bytes=16 * 1024))
    _check(out5b, x5b, row_w, col_w, "5D-tiled")

    # 4) HW not a multiple of 128 -> pad/strip path (H = W = 10)
    x4p = jax.random.normal(kx4, (B, C, 10, 10), jnp.float32)
    out4p = jax.block_until_ready(position_embedding_2d_learned(x4p, row_w, col_w))
    _check(out4p, x4p, row_w, col_w, "4D-pad")

    # 5) B = 1, single hw tile -> automatic tile split for >=2 parallel steps
    x4s = jax.random.normal(kx6, (1, C, H, W), jnp.float32)
    out4s = jax.block_until_ready(position_embedding_2d_learned(x4s, row_w, col_w))
    _check(out4s, x4s, row_w, col_w, "4D-split")

    print("KERNEL_OK")
</pallas_src>

<mosaic_0001>
module attributes {stable_mosaic.version = 11 : i64} {
  func.func @_add_pos_4d_kernel(%arg0: i32, %arg1: i32, %arg2: memref<1x4x256xf32, #tpu.memory_space<vmem>>, %arg3: memref<4x256xf32, #tpu.memory_space<vmem>>, %arg4: memref<1x4x256xf32, #tpu.memory_space<vmem>>) attributes {dimension_semantics = [#tpu.dimension_semantics<parallel>, #tpu.dimension_semantics<parallel>], iteration_bounds = array<i64: 1, 2>, scalar_prefetch = 0 : i64, scratch_operands = 0 : i64, tpu.core_type = #tpu.core_type<tc>, window_params = [{transform_indices = @transform_0, window_bounds = array<i64: 1, 4, 256>}, {pipeline_mode = #tpu.pipeline_mode<synchronous>, transform_indices = @transform_1, window_bounds = array<i64: 4, 256>}, {transform_indices = @transform_2, window_bounds = array<i64: 1, 4, 256>}]} {
    %c0 = arith.constant 0 : index
    %c0_0 = arith.constant 0 : index
    %0 = vector.load %arg3[%c0, %c0_0] : memref<4x256xf32, #tpu.memory_space<vmem>>, vector<4x256xf32>
    %c0_1 = arith.constant 0 : index
    %c0_2 = arith.constant 0 : index
    %c0_3 = arith.constant 0 : index
    %1 = vector.load %arg2[%c0_1, %c0_2, %c0_3] : memref<1x4x256xf32, #tpu.memory_space<vmem>>, vector<1x4x256xf32>
    %2 = vector.shape_cast %0 : vector<4x256xf32> to vector<1x4x256xf32>
    %3 = arith.addf %1, %2 : vector<1x4x256xf32>
    %c0_4 = arith.constant 0 : index
    %c0_5 = arith.constant 0 : index
    %c0_6 = arith.constant 0 : index
    %4 = vector.load %arg4[%c0_4, %c0_5, %c0_6] : memref<1x4x256xf32, #tpu.memory_space<vmem>>, vector<1x4x256xf32>
    tpu.vector_store %arg4[%c0_4, %c0_5, %c0_6], %3 {strides = array<i32>} : memref<1x4x256xf32, #tpu.memory_space<vmem>>, vector<1x4x256xf32>,
    return
  }
  func.func @transform_0(%arg0: i32, %arg1: i32) -> (i32, i32, i32) {
    %c0_i32 = arith.constant 0 : i32
    %c0_i32_0 = arith.constant 0 : i32
    return %arg1, %c0_i32, %arg0 : i32, i32, i32
  }
  func.func @transform_1(%arg0: i32, %arg1: i32) -> (i32, i32) {
    %c0_i32 = arith.constant 0 : i32
    %c0_i32_0 = arith.constant 0 : i32
    %c0_i32_1 = arith.constant 0 : i32
    return %c0_i32, %c0_i32_0 : i32, i32
  }
  func.func @transform_2(%arg0: i32, %arg1: i32) -> (i32, i32, i32) {
    %c0_i32 = arith.constant 0 : i32
    %c0_i32_0 = arith.constant 0 : i32
    return %arg1, %c0_i32, %arg0 : i32, i32, i32
  }
}

</mosaic_0001>

<llo_original>
// kernel: tpu_custom_call.1
$region0: #{tpu_custom_call.1}
  #allocation0 [shape = 'u32[]', space=smem, size = 0x4, offset = 0x4, fixed_abs, tag = 'smem constant byte address 0x4 - core index']
  #allocation1 [shape = 'u32[72,128]{1,0:T(1,128)}', space=vmem, size = 0x9000, scoped, tag = 'internal scratch']
  %s0 = inlined_call_operand.hbm [shape: f32[2,4,256], index: 0, kind: input, shape index: {}]
  %s1 = inlined_call_operand.hbm [shape: f32[4,256], index: 1, kind: input, shape index: {}]
  %s2 = inlined_call_operand.hbm [shape: f32[2,4,256], index: 2, kind: output, shape index: {}]
  %s3 = sld [smem:[#allocation0]]
  $region49: #{tpu_custom_call.1} parent=0
    _
  %s5 = ssub.s32 1, %s3
  %s6 = scalar_select 0, %s5, %s3
  $region1: #{tpu_custom_call.1} parent=0
    #allocation2 [shape = 'u8[8192]{0}', space=vmem, size = 0x2000, scoped, tag = 'input window, operand 0']
    #allocation3 [shape = 's32[2]{0}', space=sflag, size = 0x8, scoped, tag = 'scoped memory for tpu_custom_call.1']
    #allocation4 [shape = 's32[2]{0}', space=sflag, size = 0x8, scoped, tag = 'scoped memory for tpu_custom_call.1']
    #allocation5 [shape = 'u8[4096]{0}', space=vmem, size = 0x1000, scoped, tag = 'input window, operand 1, single buffered']
    #allocation6 [shape = 's32[1]{0}', space=sflag, size = 0x4, scoped, tag = 'scoped memory for tpu_custom_call.1']
    #allocation7 [shape = 'u8[8192]{0}', space=vmem, size = 0x2000, scoped, tag = 'output window, operand 0']
    %7 = vsyncpa [#allocation3], 0
    %s8 = scalar_lea.sflag [#allocation3], 1
    %9 = vsyncpa %s8, 0
    %10 = vsyncpa [#allocation6], 0
    %11 = vsyncpa [#allocation4], 0
    %s12 = scalar_lea.sflag [#allocation4], 1
    %13 = vsyncpa %s12, 0
    loop: start=0, step=1, limit=4
    $region2: #{tpu_custom_call.1} parent=1 // loop_pre_header
      _
    $region3: #{tpu_custom_call.1} parent=1 // loop_header
      %s15 = sphi 0, %s19
      %p16 = scmp.ge.s32.totalorder %s15, 4
      %s22 = sphi 0, %s34
      %s23 = sphi 0, %s30
      %s24 = sphi 0, %s22
      %s25 = sphi 0, %s23
      %s26 = sphi 0, %s24
      %s27 = sphi 0, %s25
      %s39 = sphi 0, %s41
      %s42 = sphi 0, %s39
      %s43 = sphi 0, %s42
      %s59 = sphi 0, %s43
      %s63 = sphi 0, %s63
      %s65 = sphi 0, %s63
      %s66 = sphi 0, %s65
      %s80 = sphi 0, %s66
      %s88 = sphi 0, %s90
      %s91 = sphi 0, %s88
      %s92 = sphi 0, %s91
      %s108 = sphi 0, %s92
    $region4: #{tpu_custom_call.1} parent=1 // loop_header_branch
      %18 = sbr.rel (%p16) target = $region8
    $region5: #{tpu_custom_call.1} parent=1 // loop_body
      %s20 = ssub.s32 %s15, 1
      %s21 = ssub.s32 %s15, 2
      %s28 = sadd.s32 1, %s23
      %p29 = scmp.ge.s32.totalorder %s28, 2
      %s30 = scalar_select %p29, 0, %s28
      %s31 = sadd.s32 1, %s22
      %s32 = scalar_select %p29, %s31, %s22
      %p33 = scmp.ge.s32.totalorder %s32, 1
      %s34 = scalar_select %p33, 0, %s32
      %s35 = ssub.s32 %s23, %s30
      %s36 = ssub.s32 %s22, %s34
      %s37 = sor.u32 %s35, %s36
      %p38 = scmp.eq.s32.totalorder %s37, 0
      %s40 = sadd.s32 %s39, 1
      %s41 = scalar_select %p38, %s39, %s40
      %p44 = pneg %p38
      %p45 = scmp.eq.s32.totalorder %s15, 1
      %p46 = por %p44, %p45
      %p47 = scmp.ne.s32.totalorder %s39, %s42
      %p48 = scmp.eq.s32.totalorder %s15, 0
      %p49 = por %p47, %p48
      %p50 = scmp.ne.s32.totalorder %s39, %s42
      %p51 = scmp.eq.s32.totalorder %s20, 1
      %p52 = por %p50, %p51
      %p53 = scmp.ne.s32.totalorder %s42, %s43
      %p54 = scmp.eq.s32.totalorder %s20, 0
      %p55 = por %p53, %p54
      %p56 = scmp.ne.s32.totalorder %s42, %s43
      %p57 = scmp.eq.s32.totalorder %s21, 1
      %p58 = por %p56, %p57
      %p60 = scmp.ne.s32.totalorder %s43, %s59
      %p61 = scmp.eq.s32.totalorder %s21, 0
      %p62 = por %p60, %p61
      %s64 = sadd.s32 %s63, 1
      %p67 = scmp.eq.s32.totalorder %s15, 1
      %p68 = scmp.ne.s32.totalorder %s63, %s65
      %p69 = scmp.eq.s32.totalorder %s15, 0
      %p70 = por %p68, %p69
      %p71 = scmp.ne.s32.totalorder %s63, %s65
      %p72 = scmp.eq.s32.totalorder %s20, 1
      %p73 = por %p71, %p72
      %p74 = scmp.ne.s32.totalorder %s65, %s66
      %p75 = scmp.eq.s32.totalorder %s20, 0
      %p76 = por %p74, %p75
      %p77 = scmp.ne.s32.totalorder %s65, %s66
      %p78 = scmp.eq.s32.totalorder %s21, 1
      %p79 = por %p77, %p78
      %p81 = scmp.ne.s32.totalorder %s66, %s80
      %p82 = scmp.eq.s32.totalorder %s21, 0
      %p83 = por %p81, %p82
      %s84 = ssub.s32 %s23, %s30
      %s85 = ssub.s32 %s22, %s34
      %s86 = sor.u32 %s84, %s85
      %p87 = scmp.eq.s32.totalorder %s86, 0
      %s89 = sadd.s32 %s88, 1
      %s90 = scalar_select %p87, %s88, %s89
      %p93 = pneg %p87
      %p94 = scmp.eq.s32.totalorder %s15, 1
      %p95 = por %p93, %p94
      %p96 = scmp.ne.s32.totalorder %s88, %s91
      %p97 = scmp.eq.s32.totalorder %s15, 0
      %p98 = por %p96, %p97
      %p99 = scmp.ne.s32.totalorder %s88, %s91
      %p100 = scmp.eq.s32.totalorder %s20, 1
      %p101 = por %p99, %p100
      %p102 = scmp.ne.s32.totalorder %s91, %s92
      %p103 = scmp.eq.s32.totalorder %s20, 0
      %p104 = por %p102, %p103
      %p105 = scmp.ne.s32.totalorder %s91, %s92
      %p106 = scmp.eq.s32.totalorder %s21, 1
      %p107 = por %p105, %p106
      %p109 = scmp.ne.s32.totalorder %s92, %s108
      %p110 = scmp.eq.s32.totalorder %s21, 0
      %p111 = por %p109, %p110
      %p112 = scmp.le.s32.totalorder 1, %s15
      %p113 = scmp.lt.s32.totalorder %s15, 3
      %p114 = pnand %p112, %p113
      %p115 = pneg %p114
      // Predicated region
      $region9: #{tpu_custom_call.1} parent=5 // pred_check
        _
      $region10: #{tpu_custom_call.1} parent=5 // pred_check_branch
        %117 = sbr.rel (%p114) target = $region12
      $region11: #{tpu_custom_call.1} parent=5 // pred_region
        %s118 = ssub.s32 %s15, 1
        // Predicated region
        $region13: #{tpu_custom_call.1} parent=11 // pred_check
          %p119 = pneg %p76
        $region14: #{tpu_custom_call.1} parent=11 // pred_check_branch
          %121 = sbr.rel (%p119) target = $region16
        $region15: #{tpu_custom_call.1} parent=11 // pred_region
          %123 = vsyncadd [#allocation6], 0
          %s125 = sshll.u32 %s1, 4
          %s126 = int_to_ptr.hbm [resolvable:$true] %s125
          %s127 = sshll.u32 [#allocation5], 4
          %s128 = int_to_ptr.vmem [resolvable:$true] %s127
          %130 = dma.hbm_to_vmem [thread:$0]  %s126, 128, %s128, [#allocation6]
        $region16: #{tpu_custom_call.1} parent=11 // pred_fallthru
          _
      $region12: #{tpu_custom_call.1} parent=5 // pred_fallthru
        _
      %p131 = scmp.lt.s32.totalorder %s15, 2
      // Predicated region
      $region17: #{tpu_custom_call.1} parent=5 // pred_check
        %p132 = pneg %p131
      $region18: #{tpu_custom_call.1} parent=5 // pred_check_branch
        %134 = sbr.rel (%p132) target = $region20
      $region19: #{tpu_custom_call.1} parent=5 // pred_region
        // Predicated region
        $region21: #{tpu_custom_call.1} parent=19 // pred_check
          %p135 = pneg %p49
        $region22: #{tpu_custom_call.1} parent=19 // pred_check_branch
          %137 = sbr.rel (%p135) target = $region24
        $region23: #{tpu_custom_call.1} parent=19 // pred_region
          %s138 = sand.u32 %s39, 1
          %s139 = scalar_lea.sflag [#allocation3], %s138
          %s140 = sand.u32 %s39, 1
          %s141 = smul.addr %s140, 8
          %s142 = scalar_lea.vmem [#allocation2], %s141
          %s143 = smul.u32 2, %s22
          %145 = vsyncadd %s139, 0
          %s146 = smul.addr %s23, 2
          %s147 = sadd.s32 %s143, %s146
          %s148 = smul.addr %s147, 4
          %s149 = scalar_lea.hbm %s0, %s148
          %s151 = sshll.u32 %s149, 4
          %s152 = int_to_ptr.hbm [resolvable:$true] %s151
          %s153 = sshll.u32 %s142, 4
          %s154 = int_to_ptr.vmem [resolvable:$true] %s153
          %156 = dma.hbm_to_vmem [thread:$0]  %s152, 128, %s154, %s139
        $region24: #{tpu_custom_call.1} parent=19 // pred_fallthru
          _
      $region20: #{tpu_custom_call.1} parent=5 // pred_fallthru
        _
      %p157 = scmp.le.s32.totalorder 1, %s15
      %p158 = scmp.lt.s32.totalorder %s15, 3
      %p159 = pnand %p157, %p158
      %p160 = pneg %p159
      // Predicated region
      $region25: #{tpu_custom_call.1} parent=5 // pred_check
        _
      $region26: #{tpu_custom_call.1} parent=5 // pred_check_branch
        %162 = sbr.rel (%p159) target = $region28
      $region27: #{tpu_custom_call.1} parent=5 // pred_region
        %s163 = ssub.s32 %s15, 1
        %s164 = sand.u32 %s42, 1
        %s165 = scalar_lea.sflag [#allocation3], %s164
        %s166 = sand.u32 %s42, 1
        %s167 = smul.addr %s166, 8
        %s168 = scalar_lea.vmem [#allocation2], %s167
        // Predicated region
        $region29: #{tpu_custom_call.1} parent=27 // pred_check
          %p169 = pneg %p55
        $region30: #{tpu_custom_call.1} parent=27 // pred_check_branch
          %171 = sbr.rel (%p169) target = $region32
        $region31: #{tpu_custom_call.1} parent=27 // pred_region
          %173 = dma.done %s165, 128
        $region32: #{tpu_custom_call.1} parent=27 // pred_fallthru
          _
        // Predicated region
        $region33: #{tpu_custom_call.1} parent=27 // pred_check
          %p174 = pneg %p76
        $region34: #{tpu_custom_call.1} parent=27 // pred_check_branch
          %176 = sbr.rel (%p174) target = $region36
        $region35: #{tpu_custom_call.1} parent=27 // pred_region
          %178 = dma.done [#allocation6], 128
        $region36: #{tpu_custom_call.1} parent=27 // pred_fallthru
          _
        %s179 = sand.u32 %s42, 1
        %s180 = scalar_lea.sflag [#allocation3], %s179
        %s181 = sand.u32 %s42, 1
        %s182 = smul.addr %s181, 8
        %s183 = scalar_lea.vmem [#allocation2], %s182
        %p184 = pneg %p55
        %p185 = pneg %p52
        %p186 = pneg %p76
        %p187 = pneg %p73
        %p188 = pneg %p104
        %p189 = pneg %p101
        %s190 = sand.u32 %s91, 1
        %s191 = scalar_lea.sflag [#allocation4], %s190
        %s192 = sand.u32 %s91, 1
        %s193 = smul.addr %s192, 8
        %s194 = scalar_lea.vmem [#allocation7], %s193
        %s195 = smul.u32 2, %s24
        %s196 = smul.u32 2, %s24
        %v197 = vld [vmem:[#allocation5] sm:$0xff]
        %v198 = vld [vmem:[%s168] sm:$0xff]
        %v199 = vadd.f32 %v198, %v197
        %200 = vst [vmem:[%s194] sm:$0xff] %v199
        %s201 = sand.u32 %s91, 1
        %s202 = scalar_lea.sflag [#allocation4], %s201
        %s203 = sand.u32 %s91, 1
        %s204 = smul.addr %s203, 8
        %s205 = scalar_lea.vmem [#allocation7], %s204
        // Predicated region
        $region37: #{tpu_custom_call.1} parent=27 // pred_check
          %p206 = pneg %p101
        $region38: #{tpu_custom_call.1} parent=27 // pred_check_branch
          %208 = sbr.rel (%p206) target = $region40
        $region39: #{tpu_custom_call.1} parent=27 // pred_region
          %s209 = smul.u32 2, %s24
          %211 = vsyncadd %s202, 0
          %s212 = smul.addr %s25, 2
          %s213 = sadd.s32 %s209, %s212
          %s214 = smul.addr %s213, 4
          %s215 = scalar_lea.hbm %s2, %s214
          %s217 = sshll.u32 %s205, 4
          %s218 = int_to_ptr.vmem [resolvable:$true] %s217
          %s219 = sshll.u32 %s215, 4
          %s220 = int_to_ptr.hbm [resolvable:$true] %s219
          %222 = dma.vmem_to_hbm [thread:$0]  %s218, 128, %s220, %s202
        $region40: #{tpu_custom_call.1} parent=27 // pred_fallthru
          _
      $region28: #{tpu_custom_call.1} parent=5 // pred_fallthru
        _
      %p223 = scmp.le.s32.totalorder 2, %s15
      // Predicated region
      $region41: #{tpu_custom_call.1} parent=5 // pred_check
        %p224 = pneg %p223
      $region42: #{tpu_custom_call.1} parent=5 // pred_check_branch
        %226 = sbr.rel (%p224) target = $region44
      $region43: #{tpu_custom_call.1} parent=5 // pred_region
        %s227 = ssub.s32 %s15, 2
        // Predicated region
        $region45: #{tpu_custom_call.1} parent=43 // pred_check
          %p228 = pneg %p107
        $region46: #{tpu_custom_call.1} parent=43 // pred_check_branch
          %230 = sbr.rel (%p228) target = $region48
        $region47: #{tpu_custom_call.1} parent=43 // pred_region
          %s231 = sand.u32 %s92, 1
          %s232 = scalar_lea.sflag [#allocation4], %s231
          %s233 = sand.u32 %s92, 1
          %s234 = smul.addr %s233, 8
          %s235 = scalar_lea.vmem [#allocation7], %s234
          %237 = dma.done %s232, 128
        $region48: #{tpu_custom_call.1} parent=43 // pred_fallthru
          _
      $region44: #{tpu_custom_call.1} parent=5 // pred_fallthru
        _
    $region6: #{tpu_custom_call.1} parent=1 // loop_footer
      %s19 = sadd.s32 1, %s15
    $region7: #{tpu_custom_call.1} parent=1 // loop_footer_branch
      %14 = sbr.rel target = $region3
    $region8: #{tpu_custom_call.1} parent=1 // loop_exit
      _
    %238 = vsyncpa [#allocation3], 1
    %s239 = scalar_lea.sflag [#allocation3], 1
    %240 = vsyncpa %s239, 1
    %241 = vsyncpa [#allocation6], 1
    %242 = vsyncpa [#allocation4], 1
    %s243 = scalar_lea.sflag [#allocation4], 1
    %244 = vsyncpa %s243, 1

</llo_original>
